<compile_context>
chip_gen: v7x
topology: tpu7x:2x2x1
jax: 0.10.0
libtpu: 0.0.40
codegen_flags: <defaults>
</compile_context>

<pallas_src>
import functools

import jax
import jax.numpy as jnp
from jax.experimental import pallas as pl
from jax.experimental.pallas import tpu as pltpu


def _round_up(x, m):
    return ((x + m - 1) // m) * m


def _pick_tile(size, align, max_tile):
    """Largest tile <= max_tile (multiple of `align`) minimizing padding of `size`."""
    size_a = _round_up(size, align)
    if size_a <= max_tile:
        return size_a
    best_t, best_pad = align, None
    t = (max_tile // align) * align
    while t >= align:
        pad = _round_up(size, t) - size
        if best_pad is None or pad < best_pad:
            best_t, best_pad = t, pad
            if pad == 0:
                break
        t -= align
    return best_t


def _head_kernel_full_k(x_ref, w_ref, b_ref, o_ref):
    # x_ref: [tm, K] (orig dtype)   w_ref: [K, tn] bf16   b_ref: [1, tn] f32
    acc = jnp.dot(x_ref[...].astype(jnp.bfloat16), w_ref[...],
                  preferred_element_type=jnp.float32)
    o_ref[...] = (acc + b_ref[...]).astype(o_ref.dtype)


def _head_kernel_k_split(x_ref, w_ref, b_ref, o_ref, acc_ref):
    # NOTE: correctness of this accumulator pattern requires K to be the LAST
    # grid axis (marked "arbitrary") and the output block index to be constant
    # across it. Do not reorder the grid or mark K "parallel".
    k = pl.program_id(2)

    @pl.when(k == 0)
    def _():
        acc_ref[...] = jnp.zeros_like(acc_ref)

    acc_ref[...] += jnp.dot(x_ref[...].astype(jnp.bfloat16), w_ref[...],
                            preferred_element_type=jnp.float32)

    @pl.when(k == pl.num_programs(2) - 1)
    def _():
        o_ref[...] = (acc_ref[...] + b_ref[...]).astype(o_ref.dtype)


_VMEM_BUDGET = 48 << 20   # keep resident tiles v7x-safe (64 MiB / TensorCore)
_VMEM_LIMIT = 56 << 20


def flatten_head_forward(x, weight, bias, *,
                         max_tm=512, max_tn=1024, max_tk=None,
                         allow_xla_fallback=True):
    """x: [bs, nvars, d_model, patch_num]
       weight: [pred_len, nf]  (PyTorch nn.Linear layout, NOT transposed)
       bias:   [pred_len]
       returns [bs, nvars, pred_len]   (Dropout(p=0) == identity)"""
    bs, nvars, d_model, patch_num = x.shape
    nf = d_model * patch_num
    pred_len, nf_w = weight.shape
    assert nf_w == nf, (nf_w, nf)
    out_dtype = x.dtype
    M = bs * nvars

    x2d = x.reshape(M, nf)   # row-major flatten == torch.flatten(start_dim=-2)

    # Tiny-GEMM fast path: pad + pallas_call + slice overhead dominates; let XLA fuse.
    if allow_xla_fallback and M * nf * pred_len < (1 << 21):
        return (x2d @ weight.T + bias).astype(out_dtype).reshape(bs, nvars, pred_len)

    x_bytes = jnp.dtype(x.dtype).itemsize
    o_bytes = jnp.dtype(out_dtype).itemsize

    # ---- tile selection --------------------------------------------------
    tm = _pick_tile(M, 8, max_tm)            # sublane-aligned rows (f32 input)
    tn = _pick_tile(pred_len, 128, max_tn)   # lane-dense output columns

    Kp128 = _round_up(nf, 128)
    # K-independent VMEM: double-buffered bias + out, plus f32 acc (conservative).
    fixed = 2 * tn * 4 + 2 * tm * tn * o_bytes + tm * tn * 4
    # Per K element: double-buffered x column (orig dtype) + W row (bf16).
    per_k = 2 * tm * x_bytes + 2 * tn * 2
    tk_cap = max(128, ((_VMEM_BUDGET - fixed) // per_k) // 128 * 128)
    if max_tk is not None:
        tk_cap = min(tk_cap, _round_up(max_tk, 128))
    tk = Kp128 if tk_cap >= Kp128 else _pick_tile(nf, 128, tk_cap)

    Mp = _round_up(M, tm)
    Np = _round_up(pred_len, tn)
    Kp = _round_up(nf, tk)
    split_k = (Kp // tk) > 1

    # Megacore (v7x): ensure >= 2 blocks along a parallel axis when M allows.
    if (Mp // tm) * (Np // tn) == 1 and M >= 16:
        tm = _round_up((M + 1) // 2, 8)
        Mp = _round_up(M, tm)

    grid_m, grid_n, grid_k = Mp // tm, Np // tn, Kp // tk

    # ---- operand prep (glue) ----------------------------------------------
    if (Mp, Kp) != (M, nf):
        x2d = jnp.pad(x2d, ((0, Mp - M), (0, Kp - nf)))
    # TODO(synk): cache the padded/transposed bf16 weight at model init (it is a
    # constant parameter) instead of re-preparing it every forward call.
    w_kn = jnp.pad(weight, ((0, Np - pred_len), (0, Kp - nf))).T.astype(jnp.bfloat16)
    b_p = jnp.pad(bias, (0, Np - pred_len)).astype(jnp.float32).reshape(1, Np)

    vmem_est = fixed + per_k * tk
    vmem_limit = int(min(max(vmem_est + (4 << 20), 32 << 20), _VMEM_LIMIT))

    cost = pl.CostEstimate(
        flops=2 * Mp * Kp * Np,
        transcendentals=0,
        bytes_accessed=(grid_n * Mp * Kp * x_bytes   # x re-read once per N tile
                        + grid_m * Kp * Np * 2       # W re-read once per M tile
                        + Np * 4 + Mp * Np * o_bytes))

    if split_k:
        kernel = _head_kernel_k_split
        grid = (grid_m, grid_n, grid_k)
        in_specs = [
            pl.BlockSpec((tm, tk), lambda i, j, k: (i, k)),   # x tile
            pl.BlockSpec((tk, tn), lambda i, j, k: (k, j)),   # W tile [K, N]
            pl.BlockSpec((1, tn), lambda i, j, k: (0, j)),    # bias tile
        ]
        out_spec = pl.BlockSpec((tm, tn), lambda i, j, k: (i, j))
        scratch = [pltpu.VMEM((tm, tn), jnp.float32)]
        semantics = ("parallel", "parallel", "arbitrary")
    else:
        kernel = _head_kernel_full_k
        grid = (grid_m, grid_n)
        in_specs = [
            pl.BlockSpec((tm, tk), lambda i, j: (i, 0)),
            pl.BlockSpec((tk, tn), lambda i, j: (0, j)),
            pl.BlockSpec((1, tn), lambda i, j: (0, j)),
        ]
        out_spec = pl.BlockSpec((tm, tn), lambda i, j: (i, j))
        scratch = []
        semantics = ("parallel", "parallel")

    out2d = pl.pallas_call(
        kernel,
        out_shape=jax.ShapeDtypeStruct((Mp, Np), out_dtype),
        grid_spec=pltpu.PrefetchScalarGridSpec(
            num_scalar_prefetch=0,
            grid=grid,
            in_specs=in_specs,
            out_specs=out_spec,
            scratch_shapes=scratch),
        compiler_params=pltpu.CompilerParams(
            dimension_semantics=semantics,
            vmem_limit_bytes=vmem_limit),
        cost_estimate=cost,
    )(x2d, w_kn, b_p)

    if (Mp, Np) != (M, pred_len):
        out2d = out2d[:M, :pred_len]
    return out2d.reshape(bs, nvars, pred_len)


if __name__ == "__main__":
    key = jax.random.PRNGKey(0)

    def make_inputs(bs, nvars, d_model, patch_num, pred_len, key):
        nf = d_model * patch_num
        kx, kw, kb = jax.random.split(key, 3)
        x = jax.random.normal(kx, (bs, nvars, d_model, patch_num), dtype=jnp.float32)
        bound = 1.0 / (nf ** 0.5)
        w = jax.random.uniform(kw, (pred_len, nf), minval=-bound, maxval=bound,
                               dtype=jnp.float32)
        b = jax.random.uniform(kb, (pred_len,), minval=-bound, maxval=bound,
                               dtype=jnp.float32)
        return x, w, b

    # --- Test 1: small PatchTST head shapes, full-K single-pass kernel path.
    bs, nvars, d_model, patch_num, pred_len = 2, 4, 16, 8, 32
    x, w, b = make_inputs(bs, nvars, d_model, patch_num, pred_len, key)
    fwd = jax.jit(functools.partial(flatten_head_forward, allow_xla_fallback=False))
    out = fwd(x, w, b)
    jax.block_until_ready(out)
    ref = x.reshape(bs, nvars, d_model * patch_num) @ w.T + b
    assert out.shape == (bs, nvars, pred_len)
    assert jnp.allclose(out, ref, atol=2e-2, rtol=2e-2), \
        float(jnp.max(jnp.abs(out - ref)))

    # --- Test 2: force the K-split accumulator path (max_tk=128 -> 3 K steps).
    bs, nvars, d_model, patch_num, pred_len = 2, 4, 32, 12, 32
    x, w, b = make_inputs(bs, nvars, d_model, patch_num, pred_len,
                          jax.random.PRNGKey(1))
    fwd2 = jax.jit(functools.partial(flatten_head_forward,
                                     allow_xla_fallback=False, max_tk=128))
    out2 = fwd2(x, w, b)
    jax.block_until_ready(out2)
    ref2 = x.reshape(bs, nvars, d_model * patch_num) @ w.T + b
    assert out2.shape == (bs, nvars, pred_len)
    assert jnp.allclose(out2, ref2, atol=2e-2, rtol=2e-2), \
        float(jnp.max(jnp.abs(out2 - ref2)))

    print("KERNEL_OK")
</pallas_src>

<mosaic_0001>
module attributes {stable_mosaic.version = 11 : i64} {
  func.func @_head_kernel_full_k(%arg0: i32, %arg1: i32, %arg2: memref<8x128xf32, #tpu.memory_space<vmem>>, %arg3: memref<128x128xbf16, #tpu.memory_space<vmem>>, %arg4: memref<1x128xf32, #tpu.memory_space<vmem>>, %arg5: memref<8x128xf32, #tpu.memory_space<vmem>>) attributes {dimension_semantics = [#tpu.dimension_semantics<parallel>, #tpu.dimension_semantics<parallel>], iteration_bounds = array<i64: 1, 1>, scalar_prefetch = 0 : i64, scratch_operands = 0 : i64, tpu.core_type = #tpu.core_type<tc>, window_params = [{transform_indices = @transform_0, window_bounds = array<i64: 8, 128>}, {transform_indices = @transform_1, window_bounds = array<i64: 128, 128>}, {transform_indices = @transform_2, window_bounds = array<i64: 1, 128>}, {transform_indices = @transform_3, window_bounds = array<i64: 8, 128>}]} {
    %c0 = arith.constant 0 : index
    %c0_0 = arith.constant 0 : index
    %0 = vector.load %arg2[%c0, %c0_0] : memref<8x128xf32, #tpu.memory_space<vmem>>, vector<8x128xf32>
    %1 = arith.truncf %0 : vector<8x128xf32> to vector<8x128xbf16>
    %c0_1 = arith.constant 0 : index
    %c0_2 = arith.constant 0 : index
    %2 = vector.load %arg3[%c0_1, %c0_2] : memref<128x128xbf16, #tpu.memory_space<vmem>>, vector<128x128xbf16>
    %cst = arith.constant dense<0.000000e+00> : vector<8x128xf32>
    %3 = tpu.matmul %1, %2, %cst {dimension_numbers = #tpu.dot_dimension_numbers<[1], [0], [0], [1], [0, 0, 1, 1], [], []>} : vector<8x128xbf16>, vector<128x128xbf16>, vector<8x128xf32> -> vector<8x128xf32>
    %c0_3 = arith.constant 0 : index
    %c0_4 = arith.constant 0 : index
    %4 = vector.load %arg4[%c0_3, %c0_4] : memref<1x128xf32, #tpu.memory_space<vmem>>, vector<1x128xf32>
    %5 = vector.broadcast %4 : vector<1x128xf32> to vector<8x128xf32>
    %6 = arith.addf %3, %5 : vector<8x128xf32>
    %c0_5 = arith.constant 0 : index
    %c0_6 = arith.constant 0 : index
    %7 = vector.load %arg5[%c0_5, %c0_6] : memref<8x128xf32, #tpu.memory_space<vmem>>, vector<8x128xf32>
    tpu.vector_store %arg5[%c0_5, %c0_6], %6 {strides = array<i32>} : memref<8x128xf32, #tpu.memory_space<vmem>>, vector<8x128xf32>,
    return
  }
  func.func @transform_0(%arg0: i32, %arg1: i32) -> (i32, i32) {
    %c0_i32 = arith.constant 0 : i32
    %c0_i32_0 = arith.constant 0 : i32
    return %arg0, %c0_i32 : i32, i32
  }
  func.func @transform_1(%arg0: i32, %arg1: i32) -> (i32, i32) {
    %c0_i32 = arith.constant 0 : i32
    %c0_i32_0 = arith.constant 0 : i32
    return %c0_i32, %arg1 : i32, i32
  }
  func.func @transform_2(%arg0: i32, %arg1: i32) -> (i32, i32) {
    %c0_i32 = arith.constant 0 : i32
    %c0_i32_0 = arith.constant 0 : i32
    return %c0_i32, %arg1 : i32, i32
  }
  func.func @transform_3(%arg0: i32, %arg1: i32) -> (i32, i32) {
    %c0_i32 = arith.constant 0 : i32
    return %arg0, %arg1 : i32, i32
  }
}

</mosaic_0001>

<llo_original>
// kernel: flatten_head_forward.1
$region0: #{flatten_head_forward.1}
  #allocation0 [shape = 'u32[]', space=smem, size = 0x4, offset = 0x4, fixed_abs, tag = 'smem constant byte address 0x4 - core index']
  #allocation1 [shape = 'u32[144,128]{1,0:T(1,128)}', space=vmem, size = 0x12000, scoped, tag = 'internal scratch']
  %s0 = inlined_call_operand.vmem [shape: f32[8,128], index: 0, kind: input, shape index: {}]
  %s1 = inlined_call_operand.vmem [shape: bf16[128,128], index: 1, kind: input, shape index: {}]
  %s2 = inlined_call_operand.vmem [shape: f32[1,128], index: 2, kind: input, shape index: {}]
  %s3 = inlined_call_operand.hbm [shape: f32[8,128], index: 3, kind: output, shape index: {}]
  %s4 = sld [smem:[#allocation0]]
  $region22: #{flatten_head_forward.1} parent=0
    _
  %s6 = ssub.s32 1, %s4
  %s7 = scalar_select 0, %s6, %s4
  $region1: #{flatten_head_forward.1} parent=0
    #allocation2 [shape = 'u8[4096]{0}', space=vmem, size = 0x1000, scoped, tag = 'output window, operand 0, single buffered']
    #allocation3 [shape = 's32[1]{0}', space=sflag, size = 0x4, scoped, tag = 'scoped memory for flatten_head_forward.1']
    %8 = vsyncpa [#allocation3], 0
    // Predicated region
    $region2: #{flatten_head_forward.1} parent=1 // pred_check
      _
    $region3: #{flatten_head_forward.1} parent=1 // pred_check_branch
      %10 = sbr.rel (0) target = $region5
    $region4: #{flatten_head_forward.1} parent=1 // pred_region
      _
    $region5: #{flatten_head_forward.1} parent=1 // pred_fallthru
      _
    // Predicated region
    $region6: #{flatten_head_forward.1} parent=1 // pred_check
      _
    $region7: #{flatten_head_forward.1} parent=1 // pred_check_branch
      %12 = sbr.rel (0) target = $region9
    $region8: #{flatten_head_forward.1} parent=1 // pred_region
      _
    $region9: #{flatten_head_forward.1} parent=1 // pred_fallthru
      _
    // Predicated region
    $region10: #{flatten_head_forward.1} parent=1 // pred_check
      _
    $region11: #{flatten_head_forward.1} parent=1 // pred_check_branch
      %14 = sbr.rel (0) target = $region13
    $region12: #{flatten_head_forward.1} parent=1 // pred_region
      _
    $region13: #{flatten_head_forward.1} parent=1 // pred_fallthru
      _
    %v16 = vld [vmem:[%s0] sm:$0xff]
    %v17 = vpack.c.bf16 %v16, %v16
    %v18 = vld [vmem:[%s1] sm:$0xf]
    %v19 = vld [vmem:[%s1 + $0x4] sm:$0xf]
    %v20 = vld [vmem:[%s1 + $0x8] sm:$0xf]
    %v21 = vld [vmem:[%s1 + $0xc] sm:$0xf]
    %v22 = vld [vmem:[%s1 + $0x10] sm:$0xf]
    %v23 = vld [vmem:[%s1 + $0x14] sm:$0xf]
    %v24 = vld [vmem:[%s1 + $0x18] sm:$0xf]
    %v25 = vld [vmem:[%s1 + $0x1c] sm:$0xf]
    %v26 = vld [vmem:[%s1 + $0x20] sm:$0xf]
    %v27 = vld [vmem:[%s1 + $0x24] sm:$0xf]
    %v28 = vld [vmem:[%s1 + $0x28] sm:$0xf]
    %v29 = vld [vmem:[%s1 + $0x2c] sm:$0xf]
    %v30 = vld [vmem:[%s1 + $0x30] sm:$0xf]
    %v31 = vld [vmem:[%s1 + $0x34] sm:$0xf]
    %v32 = vld [vmem:[%s1 + $0x38] sm:$0xf]
    %v33 = vld [vmem:[%s1 + $0x3c] sm:$0xf]
    %v34 = vld [vmem:[%s2] sm:$0x1]
    %v36 = vlaneseq
    %v37 = vshrl.u32 %v36, 7
    %v38 = vsub.s32 0, %v37
    %v39 = vrot.slane %v34, %v38
    %v57 = vunpack.c.l.b16 %v18
    %v58 = vunpack.c.l.b16 %v19
    %v59 = vunpack.c.l.b16 %v20
    %v60 = vunpack.c.l.b16 %v21
    %v61 = vunpack.c.l.b16 %v22
    %v62 = vunpack.c.l.b16 %v23
    %v63 = vunpack.c.l.b16 %v24
    %v64 = vunpack.c.l.b16 %v25
    %v65 = vunpack.c.l.b16 %v26
    %v66 = vunpack.c.l.b16 %v27
    %v67 = vunpack.c.l.b16 %v28
    %v68 = vunpack.c.l.b16 %v29
    %v69 = vunpack.c.l.b16 %v30
    %v70 = vunpack.c.l.b16 %v31
    %v71 = vunpack.c.l.b16 %v32
    %v72 = vunpack.c.l.b16 %v33
    %v73 = vpack.c.b16 %v58, %v57
    %v74 = vpack.c.b16 %v60, %v59
    %v75 = vpack.c.b16 %v62, %v61
    %v76 = vpack.c.b16 %v64, %v63
    %v77 = vpack.c.b16 %v66, %v65
    %v78 = vpack.c.b16 %v68, %v67
    %v79 = vpack.c.b16 %v70, %v69
    %v80 = vpack.c.b16 %v72, %v71
    %89 = vmatprep.subr.bf16.mxu0 0
    %90 = vmatpush1.bf16.msra.mxu0 %v73
    %91 = vmatprep.subr.bf16.mxu0 0
    %92 = vmatpush1.bf16.msra.mxu0 %v74
    %93 = vmatprep.subr.bf16.mxu0 0
    %94 = vmatpush1.bf16.msra.mxu0 %v75
    %95 = vmatprep.subr.bf16.mxu0 0
    %96 = vmatpush1.bf16.msra.mxu0 %v76
    %97 = vmatprep.subr.bf16.mxu0 0
    %98 = vmatpush1.bf16.msra.mxu0 %v77
    %99 = vmatprep.subr.bf16.mxu0 0
    %100 = vmatpush1.bf16.msra.mxu0 %v78
    %101 = vmatprep.subr.bf16.mxu0 0
    %102 = vmatpush1.bf16.msra.mxu0 %v79
    %103 = vmatprep.subr.bf16.mxu0 0
    %104 = vmatpush1.bf16.msra.mxu0 %v80
    %105 = vmatprep.subr.bf16.mxu0 0
    %106 = vmatpush1.bf16.msra.mxu0 0
    %107 = vmatprep.subr.bf16.mxu0 0
    %108 = vmatpush1.bf16.msra.mxu0 0
    %109 = vmatprep.subr.bf16.mxu0 0
    %110 = vmatpush1.bf16.msra.mxu0 0
    %111 = vmatprep.subr.bf16.mxu0 0
    %112 = vmatpush1.bf16.msra.mxu0 0
    %113 = vmatprep.subr.bf16.mxu0 0
    %114 = vmatpush1.bf16.msra.mxu0 0
    %115 = vmatprep.subr.bf16.mxu0 0
    %116 = vmatpush1.bf16.msra.mxu0 0
    %117 = vmatprep.subr.bf16.mxu0 0
    %118 = vmatpush1.bf16.msra.mxu0 0
    %119 = vmatprep.subr.bf16.mxu0 0
    %120 = vmatpush1.bf16.msra.mxu0 0
    %121 = vmatprep.mubr.bf16.mxu0 0
    %122 = vmatmul.mubr.bf16.gmra.mrb[0].mxu0 %v17
    %v123 = vpop.f32.mrb[0].mxu0
    %v124 = vadd.f32 %v39, %v123
    %v125 = vpop.f32.mrb[0].mxu0
    %v126 = vpop.f32.mrb[0].mxu0
    %v127 = vpop.f32.mrb[0].mxu0
    %128 = vdwg.mxu0
    %129 = vst [vmem:[#allocation2] sm:$0xff] %v124
    // Predicated region
    $region14: #{flatten_head_forward.1} parent=1 // pred_check
      _
    $region15: #{flatten_head_forward.1} parent=1 // pred_check_branch
      %131 = sbr.rel (0) target = $region17
    $region16: #{flatten_head_forward.1} parent=1 // pred_region
      %s133 = ssub.s32 128, 128
      %134 = vsyncadd [#allocation3], %s133
      %s136 = sshll.u32 [#allocation2], 4
      %s137 = int_to_ptr.vmem [resolvable:$true] %s136
      %139 = dma.vmem_to_hbm [thread:$0]  %s137, 128, %s3, [#allocation3]
    $region17: #{flatten_head_forward.1} parent=1 // pred_fallthru
      _
    // Predicated region
    $region18: #{flatten_head_forward.1} parent=1 // pred_check
      _
    $region19: #{flatten_head_forward.1} parent=1 // pred_check_branch
      %141 = sbr.rel (0) target = $region21
    $region20: #{flatten_head_forward.1} parent=1 // pred_region
      %142 = dma.done [#allocation3], 128
    $region21: #{flatten_head_forward.1} parent=1 // pred_fallthru
      _
    %143 = vsyncpa [#allocation3], 1

</llo_original>
